<compile_context>
chip_gen: v7x
topology: tpu7x:2x2x1
jax: 0.10.0
libtpu: 0.0.40
codegen_flags: <defaults>
</compile_context>

<pallas_src>
import jax
import jax.numpy as jnp
from jax.experimental import pallas as pl
from jax.experimental.pallas import tpu as pltpu


LANES = 128            # lane-dense output width (unmasked full-tile stores)


def _make_reward_head_kernel(tile_b):
    """Kernel factory: one grid step = one group of `tile_b` batch rows."""

    def kernel(flat_idx_ref, hs_hbm, w_ref, bias_ref, o_ref, gbuf, sem):
        # flat_idx_ref: (B_pad,) i32 SMEM scalar-prefetch -- flat eos row index
        # hs_hbm:       (B*S, H) HBM ref (backbone dtype), gathered manually
        # w_ref:        (1, H)   f32 VMEM -- header weight (resident)
        # bias_ref:     (1,)     f32 SMEM -- header bias
        # o_ref:        (tile_b, LANES) f32 VMEM -- output tile for this group
        # gbuf:         (2, tile_b, H) VMEM scratch -- double-buffered gather
        # sem:          (2,) DMA semaphores, one per buffer slot
        g = pl.program_id(0)
        ng = pl.num_programs(0)

        def issue_group(grp, slot):
            base = grp * tile_b
            for r in range(tile_b):                       # static unroll
                row = flat_idx_ref[base + r]              # SMEM scalar read
                pltpu.make_async_copy(
                    hs_hbm.at[pl.ds(row, 1), :],
                    gbuf.at[slot, pl.ds(r, 1), :],
                    sem.at[slot],
                ).start()

        def wait_group(slot):
            for r in range(tile_b):
                pltpu.make_async_copy(
                    hs_hbm.at[pl.ds(0, 1), :],            # size/sem-only descriptor
                    gbuf.at[slot, pl.ds(r, 1), :],
                    sem.at[slot],
                ).wait()

        slot = g & 1

        # Prime the pipeline: group 0 -> slot 0 at the first step.
        @pl.when(g == 0)
        def _():
            issue_group(0, 0)

        # Prefetch group g+1 into the other slot before waiting on this one,
        # so its DMA latency hides behind this group's compute + writeback.
        @pl.when(g + 1 < ng)
        def _():
            issue_group(g + 1, 1 - slot)

        wait_group(slot)

        # Whole-group head math (upcast only the gathered tile -- v5e has no
        # bf16 VPU/EUP, so the head math stays in f32 on every generation).
        rows = gbuf[slot].astype(jnp.float32)                          # (tile_b, H)
        logit = jnp.sum(rows * w_ref[...], axis=-1, keepdims=True)     # (tile_b, 1)
        logit = logit + bias_ref[0]
        score = pl.reciprocal(1.0 + jnp.exp(-logit), approx=True)      # EUP sigmoid
        o_ref[...] = jnp.broadcast_to(score, (tile_b, LANES))          # unmasked store

    return kernel


def reward_head(hidden_state, eos_indices, header_w, header_b, *,
                tile_b=64, min_pallas_batch=32):
    """hidden_state: (B, S, H) any float dtype; eos_indices: (B,) int;
    header_w: (1, H); header_b: (1,). Returns (B,) f32 scores."""
    B, S, H = hidden_state.shape
    if B == 0:
        return jnp.zeros((0,), jnp.float32)

    eos = jnp.clip(eos_indices.astype(jnp.int32), 0, S - 1)

    if B < min_pallas_batch:
        # Tiny-batch short-circuit: pallas_call launch + pipeline prologue costs
        # more than XLA's fused gather + GEMV at this scale.
        gathered = jnp.take_along_axis(hidden_state, eos[:, None, None], axis=1)[:, 0, :]
        logits = gathered.astype(jnp.float32) @ header_w.reshape(H, 1).astype(jnp.float32)
        return jax.nn.sigmoid(logits + header_b.astype(jnp.float32).reshape(1, 1))[:, 0]

    # Lane-align H (zero-pad the weight identically) so loads/multiplies are unmasked.
    H_pad = pl.cdiv(H, LANES) * LANES
    if H_pad != H:
        # TODO(synk): non-lane-aligned hidden sizes materialize a padded HBM copy;
        # standard GPT2 sizes (768/1024/1280) are already multiples of 128.
        hidden_state = jnp.pad(hidden_state, ((0, 0), (0, 0), (0, H_pad - H)))
        header_w = jnp.pad(header_w.reshape(1, H), ((0, 0), (0, H_pad - H)))

    # Keep the backbone dtype in HBM; only the gathered rows are upcast in-kernel.
    hs_flat = hidden_state.reshape(B * S, H_pad)

    # Sublane-aligned group size, clamped to the (padded) batch.
    tile_b = max(8, (int(tile_b) // 8) * 8)
    tile_b = min(tile_b, pl.cdiv(B, 8) * 8)
    B_pad = pl.cdiv(B, tile_b) * tile_b
    n_groups = B_pad // tile_b

    # Flat eos row index per (padded) batch row; padding rows re-read row B-1
    # and their outputs are discarded.
    rows = jnp.minimum(jnp.arange(B_pad, dtype=jnp.int32), B - 1)
    flat_idx = rows * S + eos[rows]                                   # (B_pad,) i32

    w = header_w.reshape(1, H_pad).astype(jnp.float32)
    bias = header_b.reshape(1).astype(jnp.float32)

    out = pl.pallas_call(
        _make_reward_head_kernel(tile_b),
        out_shape=jax.ShapeDtypeStruct((B_pad, LANES), jnp.float32),
        grid_spec=pltpu.PrefetchScalarGridSpec(
            num_scalar_prefetch=1,
            grid=(n_groups,),
            in_specs=[
                # Hidden state stays in HBM; gathered manually in-kernel.
                pl.BlockSpec(memory_space=pl.ANY),
                # Header weight: constant block index -> resident in VMEM.
                pl.BlockSpec((1, H_pad), lambda g, flat: (0, 0)),
                # Bias: single scalar in SMEM.
                pl.BlockSpec(memory_space=pltpu.MemorySpace.SMEM),
            ],
            out_specs=pl.BlockSpec((tile_b, LANES), lambda g, flat: (g, 0)),
            scratch_shapes=[
                pltpu.VMEM((2, tile_b, H_pad), hidden_state.dtype),
                pltpu.SemaphoreType.DMA((2,)),
            ],
        ),
        compiler_params=pltpu.CompilerParams(
            # Cross-step prefetch chain requires sequential grid execution.
            dimension_semantics=("arbitrary",),
        ),
    )(flat_idx, hs_flat, w, bias)

    return out[:B, 0]                     # == torch.squeeze(scores, dim=-1)


def toy_backbone(input_ids, embed_table, attention_mask=None):
    """Deterministic stand-in for model(input_ids, attention_mask).last_hidden_state."""
    del attention_mask
    return jnp.take(embed_table, input_ids, axis=0)          # (B, S, H)


def reward_forward(input_ids, eos_indices, embed_table, header_w, header_b,
                   attention_mask=None, **head_kwargs):
    hidden_state = toy_backbone(input_ids, embed_table, attention_mask)
    return reward_head(hidden_state, eos_indices, header_w, header_b, **head_kwargs)


if __name__ == "__main__":
    key = jax.random.PRNGKey(0)
    B, S, H, V = 16, 8, 128, 64   # batch, seq, hidden, vocab (small test shapes)

    k_ids, k_eos, k_emb, k_w, k_b = jax.random.split(key, 5)
    input_ids = jax.random.randint(k_ids, (B, S), 0, V, dtype=jnp.int32)
    eos_indices = jax.random.randint(k_eos, (B,), 0, S, dtype=jnp.int32)
    embed_table = jax.random.normal(k_emb, (V, H), jnp.float32) * 0.02
    # torch.nn.Linear(hidden_size, 1): weight (1, H), bias (1,)
    header_w = jax.random.normal(k_w, (1, H), jnp.float32) * (1.0 / jnp.sqrt(H))
    header_b = jax.random.normal(k_b, (1,), jnp.float32) * 0.1

    # tile_b=8 -> 2 groups: exercises the double-buffered prefetch path.
    # min_pallas_batch=1 forces the Pallas kernel (skip tiny-batch XLA fallback).
    scores = reward_forward(input_ids, eos_indices, embed_table, header_w, header_b,
                            tile_b=8, min_pallas_batch=1)
    scores = jax.block_until_ready(scores)
    assert scores.shape == (B,)

    # pure-JAX reference (take_along_dim + linear + sigmoid)
    hs = toy_backbone(input_ids, embed_table)
    gathered = jnp.take_along_axis(hs, eos_indices[:, None, None], axis=1)[:, 0, :]
    ref = jax.nn.sigmoid(gathered @ header_w.reshape(H, 1) + header_b)[:, 0]
    assert jnp.allclose(scores, ref, atol=5e-3, rtol=5e-3), (scores, ref)

    print("KERNEL_OK")
</pallas_src>

<mosaic_0001>
module attributes {stable_mosaic.version = 11 : i64} {
  func.func @kernel(%arg0: i32, %arg1: memref<16xi32, #tpu.memory_space<smem>>, %arg2: memref<128x128xf32, #tpu.memory_space<any>>, %arg3: memref<1x128xf32, #tpu.memory_space<vmem>>, %arg4: memref<1xf32, #tpu.memory_space<smem>>, %arg5: memref<8x128xf32, #tpu.memory_space<vmem>>, %arg6: memref<2x8x128xf32, #tpu.memory_space<vmem>>, %arg7: memref<2x!tpu.dma_semaphore, #tpu.memory_space<semaphore_mem>>) attributes {dimension_semantics = [#tpu.dimension_semantics<arbitrary>], iteration_bounds = array<i64: 2>, scalar_prefetch = 1 : i64, scratch_operands = 2 : i64, tpu.core_type = #tpu.core_type<tc>, window_params = [{}, {pipeline_mode = #tpu.pipeline_mode<synchronous>, transform_indices = @transform_1, window_bounds = array<i64: 1, 128>}, {transform_indices = @transform_2, window_bounds = array<i64: 1>}, {transform_indices = @transform_3, window_bounds = array<i64: 8, 128>}]} {
    %c1_i32 = arith.constant 1 : i32
    %0 = arith.andi %arg0, %c1_i32 : i32
    %c0_i32 = arith.constant 0 : i32
    %1 = arith.cmpi eq, %arg0, %c0_i32 : i32
    %2 = arith.extui %1 : i1 to i32
    %c0_i32_0 = arith.constant 0 : i32
    %3 = arith.cmpi ne, %2, %c0_i32_0 : i32
    scf.if %3 {
      %c0_38 = arith.constant 0 : index
      %68 = memref.load %arg1[%c0_38] : memref<16xi32, #tpu.memory_space<smem>>
      %c0_i32_39 = arith.constant 0 : i32
      %c0_i32_40 = arith.constant 0 : i32
      %c0_i32_41 = arith.constant 0 : i32
      %69 = tpu.memref_slice %arg2[%68, %c0_i32_41] : memref<128x128xf32, #tpu.memory_space<any>> -> memref<1x128xf32, #tpu.memory_space<any>>
      %c0_i32_42 = arith.constant 0 : i32
      %c0_i32_43 = arith.constant 0 : i32
      %70 = tpu.memref_slice %arg6[%c0_i32_39, %c0_i32_42, %c0_i32_43] : memref<2x8x128xf32, #tpu.memory_space<vmem>> -> memref<1x1x128xf32, #tpu.memory_space<vmem>>
      %71 = tpu.memref_squeeze %70 : memref<1x1x128xf32, #tpu.memory_space<vmem>> -> memref<1x128xf32, #tpu.memory_space<vmem>>
      %72 = tpu.memref_slice %arg7[%c0_i32_40] : memref<2x!tpu.dma_semaphore, #tpu.memory_space<semaphore_mem>> -> memref<1x!tpu.dma_semaphore, #tpu.memory_space<semaphore_mem>>
      %73 = tpu.memref_squeeze %72 : memref<1x!tpu.dma_semaphore, #tpu.memory_space<semaphore_mem>> -> memref<!tpu.dma_semaphore, #tpu.memory_space<semaphore_mem>>
      tpu.enqueue_dma source(%69 : memref<1x128xf32, #tpu.memory_space<any>>) target(%71 : memref<1x128xf32, #tpu.memory_space<vmem>>) target_semaphore(%73 : memref<!tpu.dma_semaphore, #tpu.memory_space<semaphore_mem>>)
      %c1 = arith.constant 1 : index
      %74 = memref.load %arg1[%c1] : memref<16xi32, #tpu.memory_space<smem>>
      %c0_i32_44 = arith.constant 0 : i32
      %c0_i32_45 = arith.constant 0 : i32
      %c0_i32_46 = arith.constant 0 : i32
      %75 = tpu.memref_slice %arg2[%74, %c0_i32_46] : memref<128x128xf32, #tpu.memory_space<any>> -> memref<1x128xf32, #tpu.memory_space<any>>
      %c1_i32_47 = arith.constant 1 : i32
      %c0_i32_48 = arith.constant 0 : i32
      %76 = tpu.memref_slice %arg6[%c0_i32_44, %c1_i32_47, %c0_i32_48] : memref<2x8x128xf32, #tpu.memory_space<vmem>> -> memref<1x1x128xf32, #tpu.memory_space<vmem>>
      %77 = tpu.memref_squeeze %76 : memref<1x1x128xf32, #tpu.memory_space<vmem>> -> memref<1x128xf32, #tpu.memory_space<vmem>>
      %78 = tpu.memref_slice %arg7[%c0_i32_45] : memref<2x!tpu.dma_semaphore, #tpu.memory_space<semaphore_mem>> -> memref<1x!tpu.dma_semaphore, #tpu.memory_space<semaphore_mem>>
      %79 = tpu.memref_squeeze %78 : memref<1x!tpu.dma_semaphore, #tpu.memory_space<semaphore_mem>> -> memref<!tpu.dma_semaphore, #tpu.memory_space<semaphore_mem>>
      tpu.enqueue_dma source(%75 : memref<1x128xf32, #tpu.memory_space<any>>) target(%77 : memref<1x128xf32, #tpu.memory_space<vmem>>) target_semaphore(%79 : memref<!tpu.dma_semaphore, #tpu.memory_space<semaphore_mem>>)
      %c2 = arith.constant 2 : index
      %80 = memref.load %arg1[%c2] : memref<16xi32, #tpu.memory_space<smem>>
      %c0_i32_49 = arith.constant 0 : i32
      %c0_i32_50 = arith.constant 0 : i32
      %c0_i32_51 = arith.constant 0 : i32
      %81 = tpu.memref_slice %arg2[%80, %c0_i32_51] : memref<128x128xf32, #tpu.memory_space<any>> -> memref<1x128xf32, #tpu.memory_space<any>>
      %c2_i32_52 = arith.constant 2 : i32
      %c0_i32_53 = arith.constant 0 : i32
      %82 = tpu.memref_slice %arg6[%c0_i32_49, %c2_i32_52, %c0_i32_53] : memref<2x8x128xf32, #tpu.memory_space<vmem>> -> memref<1x1x128xf32, #tpu.memory_space<vmem>>
      %83 = tpu.memref_squeeze %82 : memref<1x1x128xf32, #tpu.memory_space<vmem>> -> memref<1x128xf32, #tpu.memory_space<vmem>>
      %84 = tpu.memref_slice %arg7[%c0_i32_50] : memref<2x!tpu.dma_semaphore, #tpu.memory_space<semaphore_mem>> -> memref<1x!tpu.dma_semaphore, #tpu.memory_space<semaphore_mem>>
      %85 = tpu.memref_squeeze %84 : memref<1x!tpu.dma_semaphore, #tpu.memory_space<semaphore_mem>> -> memref<!tpu.dma_semaphore, #tpu.memory_space<semaphore_mem>>
      tpu.enqueue_dma source(%81 : memref<1x128xf32, #tpu.memory_space<any>>) target(%83 : memref<1x128xf32, #tpu.memory_space<vmem>>) target_semaphore(%85 : memref<!tpu.dma_semaphore, #tpu.memory_space<semaphore_mem>>)
      %c3 = arith.constant 3 : index
      %86 = memref.load %arg1[%c3] : memref<16xi32, #tpu.memory_space<smem>>
      %c0_i32_54 = arith.constant 0 : i32
      %c0_i32_55 = arith.constant 0 : i32
      %c0_i32_56 = arith.constant 0 : i32
      %87 = tpu.memref_slice %arg2[%86, %c0_i32_56] : memref<128x128xf32, #tpu.memory_space<any>> -> memref<1x128xf32, #tpu.memory_space<any>>
      %c3_i32_57 = arith.constant 3 : i32
      %c0_i32_58 = arith.constant 0 : i32
      %88 = tpu.memref_slice %arg6[%c0_i32_54, %c3_i32_57, %c0_i32_58] : memref<2x8x128xf32, #tpu.memory_space<vmem>> -> memref<1x1x128xf32, #tpu.memory_space<vmem>>
      %89 = tpu.memref_squeeze %88 : memref<1x1x128xf32, #tpu.memory_space<vmem>> -> memref<1x128xf32, #tpu.memory_space<vmem>>
      %90 = tpu.memref_slice %arg7[%c0_i32_55] : memref<2x!tpu.dma_semaphore, #tpu.memory_space<semaphore_mem>> -> memref<1x!tpu.dma_semaphore, #tpu.memory_space<semaphore_mem>>
      %91 = tpu.memref_squeeze %90 : memref<1x!tpu.dma_semaphore, #tpu.memory_space<semaphore_mem>> -> memref<!tpu.dma_semaphore, #tpu.memory_space<semaphore_mem>>
      tpu.enqueue_dma source(%87 : memref<1x128xf32, #tpu.memory_space<any>>) target(%89 : memref<1x128xf32, #tpu.memory_space<vmem>>) target_semaphore(%91 : memref<!tpu.dma_semaphore, #tpu.memory_space<semaphore_mem>>)
      %c4 = arith.constant 4 : index
      %92 = memref.load %arg1[%c4] : memref<16xi32, #tpu.memory_space<smem>>
      %c0_i32_59 = arith.constant 0 : i32
      %c0_i32_60 = arith.constant 0 : i32
      %c0_i32_61 = arith.constant 0 : i32
      %93 = tpu.memref_slice %arg2[%92, %c0_i32_61] : memref<128x128xf32, #tpu.memory_space<any>> -> memref<1x128xf32, #tpu.memory_space<any>>
      %c4_i32_62 = arith.constant 4 : i32
      %c0_i32_63 = arith.constant 0 : i32
      %94 = tpu.memref_slice %arg6[%c0_i32_59, %c4_i32_62, %c0_i32_63] : memref<2x8x128xf32, #tpu.memory_space<vmem>> -> memref<1x1x128xf32, #tpu.memory_space<vmem>>
      %95 = tpu.memref_squeeze %94 : memref<1x1x128xf32, #tpu.memory_space<vmem>> -> memref<1x128xf32, #tpu.memory_space<vmem>>
      %96 = tpu.memref_slice %arg7[%c0_i32_60] : memref<2x!tpu.dma_semaphore, #tpu.memory_space<semaphore_mem>> -> memref<1x!tpu.dma_semaphore, #tpu.memory_space<semaphore_mem>>
      %97 = tpu.memref_squeeze %96 : memref<1x!tpu.dma_semaphore, #tpu.memory_space<semaphore_mem>> -> memref<!tpu.dma_semaphore, #tpu.memory_space<semaphore_mem>>
      tpu.enqueue_dma source(%93 : memref<1x128xf32, #tpu.memory_space<any>>) target(%95 : memref<1x128xf32, #tpu.memory_space<vmem>>) target_semaphore(%97 : memref<!tpu.dma_semaphore, #tpu.memory_space<semaphore_mem>>)
      %c5 = arith.constant 5 : index
      %98 = memref.load %arg1[%c5] : memref<16xi32, #tpu.memory_space<smem>>
      %c0_i32_64 = arith.constant 0 : i32
      %c0_i32_65 = arith.constant 0 : i32
      %c0_i32_66 = arith.constant 0 : i32
      %99 = tpu.memref_slice %arg2[%98, %c0_i32_66] : memref<128x128xf32, #tpu.memory_space<any>> -> memref<1x128xf32, #tpu.memory_space<any>>
      %c5_i32_67 = arith.constant 5 : i32
      %c0_i32_68 = arith.constant 0 : i32
      %100 = tpu.memref_slice %arg6[%c0_i32_64, %c5_i32_67, %c0_i32_68] : memref<2x8x128xf32, #tpu.memory_space<vmem>> -> memref<1x1x128xf32, #tpu.memory_space<vmem>>
      %101 = tpu.memref_squeeze %100 : memref<1x1x128xf32, #tpu.memory_space<vmem>> -> memref<1x128xf32, #tpu.memory_space<vmem>>
      %102 = tpu.memref_slice %arg7[%c0_i32_65] : memref<2x!tpu.dma_semaphore, #tpu.memory_space<semaphore_mem>> -> memref<1x!tpu.dma_semaphore, #tpu.memory_space<semaphore_mem>>
      %103 = tpu.memref_squeeze %102 : memref<1x!tpu.dma_semaphore, #tpu.memory_space<semaphore_mem>> -> memref<!tpu.dma_semaphore, #tpu.memory_space<semaphore_mem>>
      tpu.enqueue_dma source(%99 : memref<1x128xf32, #tpu.memory_space<any>>) target(%101 : memref<1x128xf32, #tpu.memory_space<vmem>>) target_semaphore(%103 : memref<!tpu.dma_semaphore, #tpu.memory_space<semaphore_mem>>)
      %c6 = arith.constant 6 : index
      %104 = memref.load %arg1[%c6] : memref<16xi32, #tpu.memory_space<smem>>
      %c0_i32_69 = arith.constant 0 : i32
      %c0_i32_70 = arith.constant 0 : i32
      %c0_i32_71 = arith.constant 0 : i32
      %105 = tpu.memref_slice %arg2[%104, %c0_i32_71] : memref<128x128xf32, #tpu.memory_space<any>> -> memref<1x128xf32, #tpu.memory_space<any>>
      %c6_i32_72 = arith.constant 6 : i32
      %c0_i32_73 = arith.constant 0 : i32
      %106 = tpu.memref_slice %arg6[%c0_i32_69, %c6_i32_72, %c0_i32_73] : memref<2x8x128xf32, #tpu.memory_space<vmem>> -> memref<1x1x128xf32, #tpu.memory_space<vmem>>
      %107 = tpu.memref_squeeze %106 : memref<1x1x128xf32, #tpu.memory_space<vmem>> -> memref<1x128xf32, #tpu.memory_space<vmem>>
      %108 = tpu.memref_slice %arg7[%c0_i32_70] : memref<2x!tpu.dma_semaphore, #tpu.memory_space<semaphore_mem>> -> memref<1x!tpu.dma_semaphore, #tpu.memory_space<semaphore_mem>>
      %109 = tpu.memref_squeeze %108 : memref<1x!tpu.dma_semaphore, #tpu.memory_space<semaphore_mem>> -> memref<!tpu.dma_semaphore, #tpu.memory_space<semaphore_mem>>
      tpu.enqueue_dma source(%105 : memref<1x128xf32, #tpu.memory_space<any>>) target(%107 : memref<1x128xf32, #tpu.memory_space<vmem>>) target_semaphore(%109 : memref<!tpu.dma_semaphore, #tpu.memory_space<semaphore_mem>>)
      %c7 = arith.constant 7 : index
      %110 = memref.load %arg1[%c7] : memref<16xi32, #tpu.memory_space<smem>>
      %c0_i32_74 = arith.constant 0 : i32
      %c0_i32_75 = arith.constant 0 : i32
      %c0_i32_76 = arith.constant 0 : i32
      %111 = tpu.memref_slice %arg2[%110, %c0_i32_76] : memref<128x128xf32, #tpu.memory_space<any>> -> memref<1x128xf32, #tpu.memory_space<any>>
      %c7_i32_77 = arith.constant 7 : i32
      %c0_i32_78 = arith.constant 0 : i32
      %112 = tpu.memref_slice %arg6[%c0_i32_74, %c7_i32_77, %c0_i32_78] : memref<2x8x128xf32, #tpu.memory_space<vmem>> -> memref<1x1x128xf32, #tpu.memory_space<vmem>>
      %113 = tpu.memref_squeeze %112 : memref<1x1x128xf32, #tpu.memory_space<vmem>> -> memref<1x128xf32, #tpu.memory_space<vmem>>
      %114 = tpu.memref_slice %arg7[%c0_i32_75] : memref<2x!tpu.dma_semaphore, #tpu.memory_space<semaphore_mem>> -> memref<1x!tpu.dma_semaphore, #tpu.memory_space<semaphore_mem>>
      %115 = tpu.memref_squeeze %114 : memref<1x!tpu.dma_semaphore, #tpu.memory_space<semaphore_mem>> -> memref<!tpu.dma_semaphore, #tpu.memory_space<semaphore_mem>>
      tpu.enqueue_dma source(%111 : memref<1x128xf32, #tpu.memory_space<any>>) target(%113 : memref<1x128xf32, #tpu.memory_space<vmem>>) target_semaphore(%115 : memref<!tpu.dma_semaphore, #tpu.memory_space<semaphore_mem>>)
    } else {
    }
    %c1_i32_1 = arith.constant 1 : i32
    %4 = arith.addi %arg0, %c1_i32_1 : i32
    %c2_i32 = arith.constant 2 : i32
    %5 = arith.cmpi slt, %4, %c2_i32 : i32
    %6 = arith.extui %5 : i1 to i32
    %c0_i32_2 = arith.constant 0 : i32
    %7 = arith.cmpi ne, %6, %c0_i32_2 : i32
    scf.if %7 {
      %c1_i32_38 = arith.constant 1 : i32
      %68 = arith.addi %arg0, %c1_i32_38 : i32
      %c1_i32_39 = arith.constant 1 : i32
      %69 = arith.subi %c1_i32_39, %0 : i32
      %c8_i32 = arith.constant 8 : i32
      %70 = arith.muli %68, %c8_i32 : i32
      %c0_i32_40 = arith.constant 0 : i32
      %71 = arith.addi %70, %c0_i32_40 : i32
      %72 = arith.index_cast %71 : i32 to index
      %73 = memref.load %arg1[%72] : memref<16xi32, #tpu.memory_space<smem>>
      %c0_i32_41 = arith.constant 0 : i32
      %74 = tpu.memref_slice %arg2[%73, %c0_i32_41] : memref<128x128xf32, #tpu.memory_space<any>> -> memref<1x128xf32, #tpu.memory_space<any>>
      %c0_i32_42 = arith.constant 0 : i32
      %c0_i32_43 = arith.constant 0 : i32
      %75 = tpu.memref_slice %arg6[%69, %c0_i32_42, %c0_i32_43] : memref<2x8x128xf32, #tpu.memory_space<vmem>> -> memref<1x1x128xf32, #tpu.memory_space<vmem>>
      %76 = tpu.memref_squeeze %75 : memref<1x1x128xf32, #tpu.memory_space<vmem>> -> memref<1x128xf32, #tpu.memory_space<vmem>>
      %77 = tpu.memref_slice %arg7[%69] : memref<2x!tpu.dma_semaphore, #tpu.memory_space<semaphore_mem>> -> memref<1x!tpu.dma_semaphore, #tpu.memory_space<semaphore_mem>>
      %78 = tpu.memref_squeeze %77 : memref<1x!tpu.dma_semaphore, #tpu.memory_space<semaphore_mem>> -> memref<!tpu.dma_semaphore, #tpu.memory_space<semaphore_mem>>
      tpu.enqueue_dma source(%74 : memref<1x128xf32, #tpu.memory_space<any>>) target(%76 : memref<1x128xf32, #tpu.memory_space<vmem>>) target_semaphore(%78 : memref<!tpu.dma_semaphore, #tpu.memory_space<semaphore_mem>>)
      %c1_i32_44 = arith.constant 1 : i32
      %79 = arith.addi %70, %c1_i32_44 : i32
      %80 = arith.index_cast %79 : i32 to index
      %81 = memref.load %arg1[%80] : memref<16xi32, #tpu.memory_space<smem>>
      %c0_i32_45 = arith.constant 0 : i32
      %82 = tpu.memref_slice %arg2[%81, %c0_i32_45] : memref<128x128xf32, #tpu.memory_space<any>> -> memref<1x128xf32, #tpu.memory_space<any>>
      %c1_i32_46 = arith.constant 1 : i32
      %c0_i32_47 = arith.constant 0 : i32
      %83 = tpu.memref_slice %arg6[%69, %c1_i32_46, %c0_i32_47] : memref<2x8x128xf32, #tpu.memory_space<vmem>> -> memref<1x1x128xf32, #tpu.memory_space<vmem>>
      %84 = tpu.memref_squeeze %83 : memref<1x1x128xf32, #tpu.memory_space<vmem>> -> memref<1x128xf32, #tpu.memory_space<vmem>>
      %85 = tpu.memref_slice %arg7[%69] : memref<2x!tpu.dma_semaphore, #tpu.memory_space<semaphore_mem>> -> memref<1x!tpu.dma_semaphore, #tpu.memory_space<semaphore_mem>>
      %86 = tpu.memref_squeeze %85 : memref<1x!tpu.dma_semaphore, #tpu.memory_space<semaphore_mem>> -> memref<!tpu.dma_semaphore, #tpu.memory_space<semaphore_mem>>
      tpu.enqueue_dma source(%82 : memref<1x128xf32, #tpu.memory_space<any>>) target(%84 : memref<1x128xf32, #tpu.memory_space<vmem>>) target_semaphore(%86 : memref<!tpu.dma_semaphore, #tpu.memory_space<semaphore_mem>>)
      %c2_i32_48 = arith.constant 2 : i32
      %87 = arith.addi %70, %c2_i32_48 : i32
      %88 = arith.index_cast %87 : i32 to index
      %89 = memref.load %arg1[%88] : memref<16xi32, #tpu.memory_space<smem>>
      %c0_i32_49 = arith.constant 0 : i32
      %90 = tpu.memref_slice %arg2[%89, %c0_i32_49] : memref<128x128xf32, #tpu.memory_space<any>> -> memref<1x128xf32, #tpu.memory_space<any>>
      %c2_i32_50 = arith.constant 2 : i32
      %c0_i32_51 = arith.constant 0 : i32
      %91 = tpu.memref_slice %arg6[%69, %c2_i32_50, %c0_i32_51] : memref<2x8x128xf32, #tpu.memory_space<vmem>> -> memref<1x1x128xf32, #tpu.memory_space<vmem>>
      %92 = tpu.memref_squeeze %91 : memref<1x1x128xf32, #tpu.memory_space<vmem>> -> memref<1x128xf32, #tpu.memory_space<vmem>>
      %93 = tpu.memref_slice %arg7[%69] : memref<2x!tpu.dma_semaphore, #tpu.memory_space<semaphore_mem>> -> memref<1x!tpu.dma_semaphore, #tpu.memory_space<semaphore_mem>>
      %94 = tpu.memref_squeeze %93 : memref<1x!tpu.dma_semaphore, #tpu.memory_space<semaphore_mem>> -> memref<!tpu.dma_semaphore, #tpu.memory_space<semaphore_mem>>
      tpu.enqueue_dma source(%90 : memref<1x128xf32, #tpu.memory_space<any>>) target(%92 : memref<1x128xf32, #tpu.memory_space<vmem>>) target_semaphore(%94 : memref<!tpu.dma_semaphore, #tpu.memory_space<semaphore_mem>>)
      %c3_i32_52 = arith.constant 3 : i32
      %95 = arith.addi %70, %c3_i32_52 : i32
      %96 = arith.index_cast %95 : i32 to index
      %97 = memref.load %arg1[%96] : memref<16xi32, #tpu.memory_space<smem>>
      %c0_i32_53 = arith.constant 0 : i32
      %98 = tpu.memref_slice %arg2[%97, %c0_i32_53] : memref<128x128xf32, #tpu.memory_space<any>> -> memref<1x128xf32, #tpu.memory_space<any>>
      %c3_i32_54 = arith.constant 3 : i32
      %c0_i32_55 = arith.constant 0 : i32
      %99 = tpu.memref_slice %arg6[%69, %c3_i32_54, %c0_i32_55] : memref<2x8x128xf32, #tpu.memory_space<vmem>> -> memref<1x1x128xf32, #tpu.memory_space<vmem>>
      %100 = tpu.memref_squeeze %99 : memref<1x1x128xf32, #tpu.memory_space<vmem>> -> memref<1x128xf32, #tpu.memory_space<vmem>>
      %101 = tpu.memref_slice %arg7[%69] : memref<2x!tpu.dma_semaphore, #tpu.memory_space<semaphore_mem>> -> memref<1x!tpu.dma_semaphore, #tpu.memory_space<semaphore_mem>>
      %102 = tpu.memref_squeeze %101 : memref<1x!tpu.dma_semaphore, #tpu.memory_space<semaphore_mem>> -> memref<!tpu.dma_semaphore, #tpu.memory_space<semaphore_mem>>
      tpu.enqueue_dma source(%98 : memref<1x128xf32, #tpu.memory_space<any>>) target(%100 : memref<1x128xf32, #tpu.memory_space<vmem>>) target_semaphore(%102 : memref<!tpu.dma_semaphore, #tpu.memory_space<semaphore_mem>>)
      %c4_i32_56 = arith.constant 4 : i32
      %103 = arith.addi %70, %c4_i32_56 : i32
      %104 = arith.index_cast %103 : i32 to index
      %105 = memref.load %arg1[%104] : memref<16xi32, #tpu.memory_space<smem>>
      %c0_i32_57 = arith.constant 0 : i32
      %106 = tpu.memref_slice %arg2[%105, %c0_i32_57] : memref<128x128xf32, #tpu.memory_space<any>> -> memref<1x128xf32, #tpu.memory_space<any>>
      %c4_i32_58 = arith.constant 4 : i32
      %c0_i32_59 = arith.constant 0 : i32
      %107 = tpu.memref_slice %arg6[%69, %c4_i32_58, %c0_i32_59] : memref<2x8x128xf32, #tpu.memory_space<vmem>> -> memref<1x1x128xf32, #tpu.memory_space<vmem>>
      %108 = tpu.memref_squeeze %107 : memref<1x1x128xf32, #tpu.memory_space<vmem>> -> memref<1x128xf32, #tpu.memory_space<vmem>>
      %109 = tpu.memref_slice %arg7[%69] : memref<2x!tpu.dma_semaphore, #tpu.memory_space<semaphore_mem>> -> memref<1x!tpu.dma_semaphore, #tpu.memory_space<semaphore_mem>>
      %110 = tpu.memref_squeeze %109 : memref<1x!tpu.dma_semaphore, #tpu.memory_space<semaphore_mem>> -> memref<!tpu.dma_semaphore, #tpu.memory_space<semaphore_mem>>
      tpu.enqueue_dma source(%106 : memref<1x128xf32, #tpu.memory_space<any>>) target(%108 : memref<1x128xf32, #tpu.memory_space<vmem>>) target_semaphore(%110 : memref<!tpu.dma_semaphore, #tpu.memory_space<semaphore_mem>>)
      %c5_i32_60 = arith.constant 5 : i32
      %111 = arith.addi %70, %c5_i32_60 : i32
      %112 = arith.index_cast %111 : i32 to index
      %113 = memref.load %arg1[%112] : memref<16xi32, #tpu.memory_space<smem>>
      %c0_i32_61 = arith.constant 0 : i32
      %114 = tpu.memref_slice %arg2[%113, %c0_i32_61] : memref<128x128xf32, #tpu.memory_space<any>> -> memref<1x128xf32, #tpu.memory_space<any>>
      %c5_i32_62 = arith.constant 5 : i32
      %c0_i32_63 = arith.constant 0 : i32
      %115 = tpu.memref_slice %arg6[%69, %c5_i32_62, %c0_i32_63] : memref<2x8x128xf32, #tpu.memory_space<vmem>> -> memref<1x1x128xf32, #tpu.memory_space<vmem>>
      %116 = tpu.memref_squeeze %115 : memref<1x1x128xf32, #tpu.memory_space<vmem>> -> memref<1x128xf32, #tpu.memory_space<vmem>>
      %117 = tpu.memref_slice %arg7[%69] : memref<2x!tpu.dma_semaphore, #tpu.memory_space<semaphore_mem>> -> memref<1x!tpu.dma_semaphore, #tpu.memory_space<semaphore_mem>>
      %118 = tpu.memref_squeeze %117 : memref<1x!tpu.dma_semaphore, #tpu.memory_space<semaphore_mem>> -> memref<!tpu.dma_semaphore, #tpu.memory_space<semaphore_mem>>
      tpu.enqueue_dma source(%114 : memref<1x128xf32, #tpu.memory_space<any>>) target(%116 : memref<1x128xf32, #tpu.memory_space<vmem>>) target_semaphore(%118 : memref<!tpu.dma_semaphore, #tpu.memory_space<semaphore_mem>>)
      %c6_i32_64 = arith.constant 6 : i32
      %119 = arith.addi %70, %c6_i32_64 : i32
      %120 = arith.index_cast %119 : i32 to index
      %121 = memref.load %arg1[%120] : memref<16xi32, #tpu.memory_space<smem>>
      %c0_i32_65 = arith.constant 0 : i32
      %122 = tpu.memref_slice %arg2[%121, %c0_i32_65] : memref<128x128xf32, #tpu.memory_space<any>> -> memref<1x128xf32, #tpu.memory_space<any>>
      %c6_i32_66 = arith.constant 6 : i32
      %c0_i32_67 = arith.constant 0 : i32
      %123 = tpu.memref_slice %arg6[%69, %c6_i32_66, %c0_i32_67] : memref<2x8x128xf32, #tpu.memory_space<vmem>> -> memref<1x1x128xf32, #tpu.memory_space<vmem>>
      %124 = tpu.memref_squeeze %123 : memref<1x1x128xf32, #tpu.memory_space<vmem>> -> memref<1x128xf32, #tpu.memory_space<vmem>>
      %125 = tpu.memref_slice %arg7[%69] : memref<2x!tpu.dma_semaphore, #tpu.memory_space<semaphore_mem>> -> memref<1x!tpu.dma_semaphore, #tpu.memory_space<semaphore_mem>>
      %126 = tpu.memref_squeeze %125 : memref<1x!tpu.dma_semaphore, #tpu.memory_space<semaphore_mem>> -> memref<!tpu.dma_semaphore, #tpu.memory_space<semaphore_mem>>
      tpu.enqueue_dma source(%122 : memref<1x128xf32, #tpu.memory_space<any>>) target(%124 : memref<1x128xf32, #tpu.memory_space<vmem>>) target_semaphore(%126 : memref<!tpu.dma_semaphore, #tpu.memory_space<semaphore_mem>>)
      %c7_i32_68 = arith.constant 7 : i32
      %127 = arith.addi %70, %c7_i32_68 : i32
      %128 = arith.index_cast %127 : i32 to index
      %129 = memref.load %arg1[%128] : memref<16xi32, #tpu.memory_space<smem>>
      %c0_i32_69 = arith.constant 0 : i32
      %130 = tpu.memref_slice %arg2[%129, %c0_i32_69] : memref<128x128xf32, #tpu.memory_space<any>> -> memref<1x128xf32, #tpu.memory_space<any>>
      %c7_i32_70 = arith.constant 7 : i32
      %c0_i32_71 = arith.constant 0 : i32
      %131 = tpu.memref_slice %arg6[%69, %c7_i32_70, %c0_i32_71] : memref<2x8x128xf32, #tpu.memory_space<vmem>> -> memref<1x1x128xf32, #tpu.memory_space<vmem>>
      %132 = tpu.memref_squeeze %131 : memref<1x1x128xf32, #tpu.memory_space<vmem>> -> memref<1x128xf32, #tpu.memory_space<vmem>>
      %133 = tpu.memref_slice %arg7[%69] : memref<2x!tpu.dma_semaphore, #tpu.memory_space<semaphore_mem>> -> memref<1x!tpu.dma_semaphore, #tpu.memory_space<semaphore_mem>>
      %134 = tpu.memref_squeeze %133 : memref<1x!tpu.dma_semaphore, #tpu.memory_space<semaphore_mem>> -> memref<!tpu.dma_semaphore, #tpu.memory_space<semaphore_mem>>
      tpu.enqueue_dma source(%130 : memref<1x128xf32, #tpu.memory_space<any>>) target(%132 : memref<1x128xf32, #tpu.memory_space<vmem>>) target_semaphore(%134 : memref<!tpu.dma_semaphore, #tpu.memory_space<semaphore_mem>>)
    } else {
    }
    %c0_i32_3 = arith.constant 0 : i32
    %c0_i32_4 = arith.constant 0 : i32
    %8 = tpu.memref_slice %arg2[%c0_i32_3, %c0_i32_4] : memref<128x128xf32, #tpu.memory_space<any>> -> memref<1x128xf32, #tpu.memory_space<any>>
    %c0_i32_5 = arith.constant 0 : i32
    %c0_i32_6 = arith.constant 0 : i32
    %9 = tpu.memref_slice %arg6[%0, %c0_i32_5, %c0_i32_6] : memref<2x8x128xf32, #tpu.memory_space<vmem>> -> memref<1x1x128xf32, #tpu.memory_space<vmem>>
    %10 = tpu.memref_squeeze %9 : memref<1x1x128xf32, #tpu.memory_space<vmem>> -> memref<1x128xf32, #tpu.memory_space<vmem>>
    %11 = tpu.memref_slice %arg7[%0] : memref<2x!tpu.dma_semaphore, #tpu.memory_space<semaphore_mem>> -> memref<1x!tpu.dma_semaphore, #tpu.memory_space<semaphore_mem>>
    %12 = tpu.memref_squeeze %11 : memref<1x!tpu.dma_semaphore, #tpu.memory_space<semaphore_mem>> -> memref<!tpu.dma_semaphore, #tpu.memory_space<semaphore_mem>>
    tpu.wait_dma2 semaphore(%12 : memref<!tpu.dma_semaphore, #tpu.memory_space<semaphore_mem>>) src(%8 : memref<1x128xf32, #tpu.memory_space<any>>) dst(%10 : memref<1x128xf32, #tpu.memory_space<vmem>>)
    %c0_i32_7 = arith.constant 0 : i32
    %c0_i32_8 = arith.constant 0 : i32
    %13 = tpu.memref_slice %arg2[%c0_i32_7, %c0_i32_8] : memref<128x128xf32, #tpu.memory_space<any>> -> memref<1x128xf32, #tpu.memory_space<any>>
    %c1_i32_9 = arith.constant 1 : i32
    %c0_i32_10 = arith.constant 0 : i32
    %14 = tpu.memref_slice %arg6[%0, %c1_i32_9, %c0_i32_10] : memref<2x8x128xf32, #tpu.memory_space<vmem>> -> memref<1x1x128xf32, #tpu.memory_space<vmem>>
    %15 = tpu.memref_squeeze %14 : memref<1x1x128xf32, #tpu.memory_space<vmem>> -> memref<1x128xf32, #tpu.memory_space<vmem>>
    %16 = tpu.memref_slice %arg7[%0] : memref<2x!tpu.dma_semaphore, #tpu.memory_space<semaphore_mem>> -> memref<1x!tpu.dma_semaphore, #tpu.memory_space<semaphore_mem>>
    %17 = tpu.memref_squeeze %16 : memref<1x!tpu.dma_semaphore, #tpu.memory_space<semaphore_mem>> -> memref<!tpu.dma_semaphore, #tpu.memory_space<semaphore_mem>>
    tpu.wait_dma2 semaphore(%17 : memref<!tpu.dma_semaphore, #tpu.memory_space<semaphore_mem>>) src(%13 : memref<1x128xf32, #tpu.memory_space<any>>) dst(%15 : memref<1x128xf32, #tpu.memory_space<vmem>>)
    %c0_i32_11 = arith.constant 0 : i32
    %c0_i32_12 = arith.constant 0 : i32
    %18 = tpu.memref_slice %arg2[%c0_i32_11, %c0_i32_12] : memref<128x128xf32, #tpu.memory_space<any>> -> memref<1x128xf32, #tpu.memory_space<any>>
    %c2_i32_13 = arith.constant 2 : i32
    %c0_i32_14 = arith.constant 0 : i32
    %19 = tpu.memref_slice %arg6[%0, %c2_i32_13, %c0_i32_14] : memref<2x8x128xf32, #tpu.memory_space<vmem>> -> memref<1x1x128xf32, #tpu.memory_space<vmem>>
    %20 = tpu.memref_squeeze %19 : memref<1x1x128xf32, #tpu.memory_space<vmem>> -> memref<1x128xf32, #tpu.memory_space<vmem>>
    %21 = tpu.memref_slice %arg7[%0] : memref<2x!tpu.dma_semaphore, #tpu.memory_space<semaphore_mem>> -> memref<1x!tpu.dma_semaphore, #tpu.memory_space<semaphore_mem>>
    %22 = tpu.memref_squeeze %21 : memref<1x!tpu.dma_semaphore, #tpu.memory_space<semaphore_mem>> -> memref<!tpu.dma_semaphore, #tpu.memory_space<semaphore_mem>>
    tpu.wait_dma2 semaphore(%22 : memref<!tpu.dma_semaphore, #tpu.memory_space<semaphore_mem>>) src(%18 : memref<1x128xf32, #tpu.memory_space<any>>) dst(%20 : memref<1x128xf32, #tpu.memory_space<vmem>>)
    %c0_i32_15 = arith.constant 0 : i32
    %c0_i32_16 = arith.constant 0 : i32
    %23 = tpu.memref_slice %arg2[%c0_i32_15, %c0_i32_16] : memref<128x128xf32, #tpu.memory_space<any>> -> memref<1x128xf32, #tpu.memory_space<any>>
    %c3_i32 = arith.constant 3 : i32
    %c0_i32_17 = arith.constant 0 : i32
    %24 = tpu.memref_slice %arg6[%0, %c3_i32, %c0_i32_17] : memref<2x8x128xf32, #tpu.memory_space<vmem>> -> memref<1x1x128xf32, #tpu.memory_space<vmem>>
    %25 = tpu.memref_squeeze %24 : memref<1x1x128xf32, #tpu.memory_space<vmem>> -> memref<1x128xf32, #tpu.memory_space<vmem>>
    %26 = tpu.memref_slice %arg7[%0] : memref<2x!tpu.dma_semaphore, #tpu.memory_space<semaphore_mem>> -> memref<1x!tpu.dma_semaphore, #tpu.memory_space<semaphore_mem>>
    %27 = tpu.memref_squeeze %26 : memref<1x!tpu.dma_semaphore, #tpu.memory_space<semaphore_mem>> -> memref<!tpu.dma_semaphore, #tpu.memory_space<semaphore_mem>>
    tpu.wait_dma2 semaphore(%27 : memref<!tpu.dma_semaphore, #tpu.memory_space<semaphore_mem>>) src(%23 : memref<1x128xf32, #tpu.memory_space<any>>) dst(%25 : memref<1x128xf32, #tpu.memory_space<vmem>>)
    %c0_i32_18 = arith.constant 0 : i32
    %c0_i32_19 = arith.constant 0 : i32
    %28 = tpu.memref_slice %arg2[%c0_i32_18, %c0_i32_19] : memref<128x128xf32, #tpu.memory_space<any>> -> memref<1x128xf32, #tpu.memory_space<any>>
    %c4_i32 = arith.constant 4 : i32
    %c0_i32_20 = arith.constant 0 : i32
    %29 = tpu.memref_slice %arg6[%0, %c4_i32, %c0_i32_20] : memref<2x8x128xf32, #tpu.memory_space<vmem>> -> memref<1x1x128xf32, #tpu.memory_space<vmem>>
    %30 = tpu.memref_squeeze %29 : memref<1x1x128xf32, #tpu.memory_space<vmem>> -> memref<1x128xf32, #tpu.memory_space<vmem>>
    %31 = tpu.memref_slice %arg7[%0] : memref<2x!tpu.dma_semaphore, #tpu.memory_space<semaphore_mem>> -> memref<1x!tpu.dma_semaphore, #tpu.memory_space<semaphore_mem>>
    %32 = tpu.memref_squeeze %31 : memref<1x!tpu.dma_semaphore, #tpu.memory_space<semaphore_mem>> -> memref<!tpu.dma_semaphore, #tpu.memory_space<semaphore_mem>>
    tpu.wait_dma2 semaphore(%32 : memref<!tpu.dma_semaphore, #tpu.memory_space<semaphore_mem>>) src(%28 : memref<1x128xf32, #tpu.memory_space<any>>) dst(%30 : memref<1x128xf32, #tpu.memory_space<vmem>>)
    %c0_i32_21 = arith.constant 0 : i32
    %c0_i32_22 = arith.constant 0 : i32
    %33 = tpu.memref_slice %arg2[%c0_i32_21, %c0_i32_22] : memref<128x128xf32, #tpu.memory_space<any>> -> memref<1x128xf32, #tpu.memory_space<any>>
    %c5_i32 = arith.constant 5 : i32
    %c0_i32_23 = arith.constant 0 : i32
    %34 = tpu.memref_slice %arg6[%0, %c5_i32, %c0_i32_23] : memref<2x8x128xf32, #tpu.memory_space<vmem>> -> memref<1x1x128xf32, #tpu.memory_space<vmem>>
    %35 = tpu.memref_squeeze %34 : memref<1x1x128xf32, #tpu.memory_space<vmem>> -> memref<1x128xf32, #tpu.memory_space<vmem>>
    %36 = tpu.memref_slice %arg7[%0] : memref<2x!tpu.dma_semaphore, #tpu.memory_space<semaphore_mem>> -> memref<1x!tpu.dma_semaphore, #tpu.memory_space<semaphore_mem>>
    %37 = tpu.memref_squeeze %36 : memref<1x!tpu.dma_semaphore, #tpu.memory_space<semaphore_mem>> -> memref<!tpu.dma_semaphore, #tpu.memory_space<semaphore_mem>>
    tpu.wait_dma2 semaphore(%37 : memref<!tpu.dma_semaphore, #tpu.memory_space<semaphore_mem>>) src(%33 : memref<1x128xf32, #tpu.memory_space<any>>) dst(%35 : memref<1x128xf32, #tpu.memory_space<vmem>>)
    %c0_i32_24 = arith.constant 0 : i32
    %c0_i32_25 = arith.constant 0 : i32
    %38 = tpu.memref_slice %arg2[%c0_i32_24, %c0_i32_25] : memref<128x128xf32, #tpu.memory_space<any>> -> memref<1x128xf32, #tpu.memory_space<any>>
    %c6_i32 = arith.constant 6 : i32
    %c0_i32_26 = arith.constant 0 : i32
    %39 = tpu.memref_slice %arg6[%0, %c6_i32, %c0_i32_26] : memref<2x8x128xf32, #tpu.memory_space<vmem>> -> memref<1x1x128xf32, #tpu.memory_space<vmem>>
    %40 = tpu.memref_squeeze %39 : memref<1x1x128xf32, #tpu.memory_space<vmem>> -> memref<1x128xf32, #tpu.memory_space<vmem>>
    %41 = tpu.memref_slice %arg7[%0] : memref<2x!tpu.dma_semaphore, #tpu.memory_space<semaphore_mem>> -> memref<1x!tpu.dma_semaphore, #tpu.memory_space<semaphore_mem>>
    %42 = tpu.memref_squeeze %41 : memref<1x!tpu.dma_semaphore, #tpu.memory_space<semaphore_mem>> -> memref<!tpu.dma_semaphore, #tpu.memory_space<semaphore_mem>>
    tpu.wait_dma2 semaphore(%42 : memref<!tpu.dma_semaphore, #tpu.memory_space<semaphore_mem>>) src(%38 : memref<1x128xf32, #tpu.memory_space<any>>) dst(%40 : memref<1x128xf32, #tpu.memory_space<vmem>>)
    %c0_i32_27 = arith.constant 0 : i32
    %c0_i32_28 = arith.constant 0 : i32
    %43 = tpu.memref_slice %arg2[%c0_i32_27, %c0_i32_28] : memref<128x128xf32, #tpu.memory_space<any>> -> memref<1x128xf32, #tpu.memory_space<any>>
    %c7_i32 = arith.constant 7 : i32
    %c0_i32_29 = arith.constant 0 : i32
    %44 = tpu.memref_slice %arg6[%0, %c7_i32, %c0_i32_29] : memref<2x8x128xf32, #tpu.memory_space<vmem>> -> memref<1x1x128xf32, #tpu.memory_space<vmem>>
    %45 = tpu.memref_squeeze %44 : memref<1x1x128xf32, #tpu.memory_space<vmem>> -> memref<1x128xf32, #tpu.memory_space<vmem>>
    %46 = tpu.memref_slice %arg7[%0] : memref<2x!tpu.dma_semaphore, #tpu.memory_space<semaphore_mem>> -> memref<1x!tpu.dma_semaphore, #tpu.memory_space<semaphore_mem>>
    %47 = tpu.memref_squeeze %46 : memref<1x!tpu.dma_semaphore, #tpu.memory_space<semaphore_mem>> -> memref<!tpu.dma_semaphore, #tpu.memory_space<semaphore_mem>>
    tpu.wait_dma2 semaphore(%47 : memref<!tpu.dma_semaphore, #tpu.memory_space<semaphore_mem>>) src(%43 : memref<1x128xf32, #tpu.memory_space<any>>) dst(%45 : memref<1x128xf32, #tpu.memory_space<vmem>>)
    %48 = arith.index_cast %0 : i32 to index
    %c0 = arith.constant 0 : index
    %c0_30 = arith.constant 0 : index
    %49 = vector.load %arg6[%48, %c0, %c0_30] : memref<2x8x128xf32, #tpu.memory_space<vmem>>, vector<1x8x128xf32>
    %50 = vector.shape_cast %49 : vector<1x8x128xf32> to vector<8x128xf32>
    %c0_31 = arith.constant 0 : index
    %c0_32 = arith.constant 0 : index
    %51 = vector.load %arg3[%c0_31, %c0_32] : memref<1x128xf32, #tpu.memory_space<vmem>>, vector<1x128xf32>
    %52 = vector.broadcast %51 : vector<1x128xf32> to vector<8x128xf32>
    %53 = arith.mulf %50, %52 : vector<8x128xf32>
    %cst = arith.constant dense<0.000000e+00> : vector<8xf32>
    %54 = vector.multi_reduction <add>, %53, %cst [1] : vector<8x128xf32> to vector<8xf32>
    %55 = vector.shape_cast %54 : vector<8xf32> to vector<8x1xf32>
    %c0_33 = arith.constant 0 : index
    %56 = memref.load %arg4[%c0_33] : memref<1xf32, #tpu.memory_space<smem>>
    %57 = vector.broadcast %56 : f32 to vector<8x1xf32>
    %58 = arith.addf %55, %57 : vector<8x1xf32>
    %cst_34 = arith.constant 0.000000e+00 : f32
    %59 = vector.broadcast %cst_34 : f32 to vector<8x1xf32>
    %60 = arith.subf %59, %58 : vector<8x1xf32>
    %61 = math.exp %60 : vector<8x1xf32>
    %cst_35 = arith.constant 1.000000e+00 : f32
    %62 = vector.broadcast %cst_35 : f32 to vector<8x1xf32>
    %63 = arith.addf %62, %61 : vector<8x1xf32>
    %64 = tpu.reciprocal %63 {approx = true} : vector<8x1xf32> -> vector<8x1xf32>
    %65 = vector.shape_cast %64 : vector<8x1xf32> to vector<8x1xf32>
    %66 = vector.broadcast %65 : vector<8x1xf32> to vector<8x128xf32>
    %c0_36 = arith.constant 0 : index
    %c0_37 = arith.constant 0 : index
    %67 = vector.load %arg5[%c0_36, %c0_37] : memref<8x128xf32, #tpu.memory_space<vmem>>, vector<8x128xf32>
    tpu.vector_store %arg5[%c0_36, %c0_37], %66 {strides = array<i32>} : memref<8x128xf32, #tpu.memory_space<vmem>>, vector<8x128xf32>,
    return
  }
  func.func @transform_1(%arg0: i32, %arg1: memref<16xi32, #tpu.memory_space<smem>>) -> (i32, i32) {
    %c0_i32 = arith.constant 0 : i32
    %c0_i32_0 = arith.constant 0 : i32
    %c0_i32_1 = arith.constant 0 : i32
    return %c0_i32, %c0_i32_0 : i32, i32
  }
  func.func @transform_2(%arg0: i32, %arg1: memref<16xi32, #tpu.memory_space<smem>>) -> i32 {
    %c0_i32 = arith.constant 0 : i32
    %c0_i32_0 = arith.constant 0 : i32
    return %c0_i32 : i32
  }
  func.func @transform_3(%arg0: i32, %arg1: memref<16xi32, #tpu.memory_space<smem>>) -> (i32, i32) {
    %c0_i32 = arith.constant 0 : i32
    %c0_i32_0 = arith.constant 0 : i32
    return %arg0, %c0_i32 : i32, i32
  }
}

</mosaic_0001>

<llo_original>
// kernel: tpu_custom_call.1
$region0: #{tpu_custom_call.1}
  #allocation0 [shape = 'u32[]', space=smem, size = 0x4, offset = 0x4, fixed_abs, tag = 'smem constant byte address 0x4 - core index']
  #allocation1 [shape = 'u32[144,128]{1,0:T(1,128)}', space=vmem, size = 0x12000, scoped, tag = 'internal scratch']
  #allocation2 [shape = 'f32[2,8,128]{2,1,0:T(8,128)}', space=vmem, size = 0x2000, scoped, tag = 'scratch operand']
  #allocation3 [shape = 's32[2]{0}', space=sflag, size = 0x8, scoped, tag = 'scratch operand']
  #allocation4 [shape = 's32[1]{0}', space=sflag, size = 0x4, scoped, tag = 'scoped memory for tpu_custom_call.1']
  #allocation5 [shape = 'u8[512]{0}', space=smem, size = 0x200, scoped, tag = 'prefetched SMEM operand 0']
  #allocation6 [shape = 'f32[1]{0:T(128)S(6)}', space=smem, size = 0x200, scoped, tag = 'scoped memory for tpu_custom_call.1']
  #allocation9 [shape = 's32[]', space=sflag, size = 0x4, offset = 0, fixed_abs, tag = 'sflag constant byte address 0x0 - dummy sync flag']
  #allocation10 [shape = 's32[]', space=sflag, size = 0x4, offset = 0, fixed_abs, tag = 'sflag constant byte address 0x0 - dummy sync flag']
  #allocation11 [shape = 'u32[]', space=smem, size = 0x4, offset = 0x44, fixed_abs, tag = 'smem constant byte address 0x44 - assertion arg 0']
  #allocation12 [shape = 'u32[]', space=smem, size = 0x4, offset = 0x48, fixed_abs, tag = 'smem constant byte address 0x48 - assertion arg 1']
  #allocation13 [shape = 's32[]', space=sflag, size = 0x4, offset = 0, fixed_abs, tag = 'sflag constant byte address 0x0 - dummy sync flag']
  #allocation14 [shape = 's32[]', space=sflag, size = 0x4, offset = 0, fixed_abs, tag = 'sflag constant byte address 0x0 - dummy sync flag']
  #allocation15 [shape = 's32[]', space=sflag, size = 0x4, offset = 0, fixed_abs, tag = 'sflag constant byte address 0x0 - dummy sync flag']
  #allocation16 [shape = 's32[]', space=sflag, size = 0x4, offset = 0, fixed_abs, tag = 'sflag constant byte address 0x0 - dummy sync flag']
  #allocation17 [shape = 's32[]', space=sflag, size = 0x4, offset = 0, fixed_abs, tag = 'sflag constant byte address 0x0 - dummy sync flag']
  #allocation18 [shape = 's32[]', space=sflag, size = 0x4, offset = 0, fixed_abs, tag = 'sflag constant byte address 0x0 - dummy sync flag']
  #allocation19 [shape = 's32[]', space=sflag, size = 0x4, offset = 0, fixed_abs, tag = 'sflag constant byte address 0x0 - dummy sync flag']
  #allocation20 [shape = 's32[]', space=sflag, size = 0x4, offset = 0, fixed_abs, tag = 'sflag constant byte address 0x0 - dummy sync flag']
  #allocation21 [shape = 's32[]', space=sflag, size = 0x4, offset = 0, fixed_abs, tag = 'sflag constant byte address 0x0 - dummy sync flag']
  #allocation22 [shape = 's32[]', space=sflag, size = 0x4, offset = 0, fixed_abs, tag = 'sflag constant byte address 0x0 - dummy sync flag']
  #allocation23 [shape = 's32[]', space=sflag, size = 0x4, offset = 0, fixed_abs, tag = 'sflag constant byte address 0x0 - dummy sync flag']
  #allocation24 [shape = 's32[]', space=sflag, size = 0x4, offset = 0, fixed_abs, tag = 'sflag constant byte address 0x0 - dummy sync flag']
  #allocation25 [shape = 's32[]', space=sflag, size = 0x4, offset = 0, fixed_abs, tag = 'sflag constant byte address 0x0 - dummy sync flag']
  #allocation26 [shape = 's32[]', space=sflag, size = 0x4, offset = 0, fixed_abs, tag = 'sflag constant byte address 0x0 - dummy sync flag']
  #allocation27 [shape = 's32[]', space=sflag, size = 0x4, offset = 0, fixed_abs, tag = 'sflag constant byte address 0x0 - dummy sync flag']
  #allocation28 [shape = 's32[]', space=sflag, size = 0x4, offset = 0, fixed_abs, tag = 'sflag constant byte address 0x0 - dummy sync flag']
  #allocation29 [shape = 's32[]', space=sflag, size = 0x4, offset = 0, fixed_abs, tag = 'sflag constant byte address 0x0 - dummy sync flag']
  #allocation30 [shape = 's32[]', space=sflag, size = 0x4, offset = 0, fixed_abs, tag = 'sflag constant byte address 0x0 - dummy sync flag']
  #allocation31 [shape = 's32[]', space=sflag, size = 0x4, offset = 0, fixed_abs, tag = 'sflag constant byte address 0x0 - dummy sync flag']
  #allocation32 [shape = 's32[]', space=sflag, size = 0x4, offset = 0, fixed_abs, tag = 'sflag constant byte address 0x0 - dummy sync flag']
  #allocation33 [shape = 's32[]', space=sflag, size = 0x4, offset = 0, fixed_abs, tag = 'sflag constant byte address 0x0 - dummy sync flag']
  #allocation34 [shape = 's32[]', space=sflag, size = 0x4, offset = 0, fixed_abs, tag = 'sflag constant byte address 0x0 - dummy sync flag']
  #allocation35 [shape = 's32[]', space=sflag, size = 0x4, offset = 0, fixed_abs, tag = 'sflag constant byte address 0x0 - dummy sync flag']
  #allocation36 [shape = 's32[]', space=sflag, size = 0x4, offset = 0, fixed_abs, tag = 'sflag constant byte address 0x0 - dummy sync flag']
  #allocation37 [shape = 's32[]', space=sflag, size = 0x4, offset = 0, fixed_abs, tag = 'sflag constant byte address 0x0 - dummy sync flag']
  #allocation38 [shape = 's32[]', space=sflag, size = 0x4, offset = 0, fixed_abs, tag = 'sflag constant byte address 0x0 - dummy sync flag']
  #allocation39 [shape = 's32[]', space=sflag, size = 0x4, offset = 0, fixed_abs, tag = 'sflag constant byte address 0x0 - dummy sync flag']
  #allocation40 [shape = 's32[]', space=sflag, size = 0x4, offset = 0, fixed_abs, tag = 'sflag constant byte address 0x0 - dummy sync flag']
  #allocation41 [shape = 's32[]', space=sflag, size = 0x4, offset = 0, fixed_abs, tag = 'sflag constant byte address 0x0 - dummy sync flag']
  #allocation42 [shape = 's32[]', space=sflag, size = 0x4, offset = 0, fixed_abs, tag = 'sflag constant byte address 0x0 - dummy sync flag']
  %s0 = inlined_call_operand.vmem [shape: s32[16], index: 0, kind: input, shape index: {}]
  %s1 = inlined_call_operand.hbm [shape: f32[128,128], index: 1, kind: input, shape index: {}]
  %s2 = inlined_call_operand.vmem [shape: f32[1,128], index: 2, kind: input, shape index: {}]
  %s3 = inlined_call_operand.<no memory space> [shape: f32[1], index: 3, kind: input, shape index: {}]
  %s4 = inlined_call_operand.hbm [shape: f32[16,128], index: 4, kind: output, shape index: {}]
  %s5 = sld [smem:[#allocation0]]
  $region113: #{tpu_custom_call.1} parent=0
    _
  %s7 = ssub.s32 1, %s5
  %s8 = scalar_select 0, %s7, %s5
  %s9 = sshll.u32 %s0, 4
  %s10 = int_to_ptr.vmem [resolvable:$true] %s9
  %12 = dma.vmem_to_smem %s10, 16, [#allocation5], [#allocation4]
  %13 = sst [smem:[#allocation6]] %s3
  %14 = dma.done [#allocation4], 16
  %15 = sfence
  $region1: #{tpu_custom_call.1} parent=0
    #allocation7 [shape = 'u8[8192]{0}', space=vmem, size = 0x2000, scoped, tag = 'output window, operand 0']
    #allocation8 [shape = 's32[2]{0}', space=sflag, size = 0x8, scoped, tag = 'scoped memory for tpu_custom_call.1']
    %16 = vsyncpa [#allocation8], 0
    %s17 = scalar_lea.sflag [#allocation8], 1
    %18 = vsyncpa %s17, 0
    loop: start=0, step=1, limit=4
    $region2: #{tpu_custom_call.1} parent=1 // loop_pre_header
      _
    $region3: #{tpu_custom_call.1} parent=1 // loop_header
      %s20 = sphi 0, %s24
      %p21 = scmp.ge.s32.totalorder %s20, 4
      %s28 = sphi 0, %s28
      %s30 = sphi 0, %s28
      %s31 = sphi 0, %s30
      %s45 = sphi 0, %s31
      %s49 = sphi 0, %s49
      %s51 = sphi 0, %s49
      %s52 = sphi 0, %s51
      %s66 = sphi 0, %s52
      %s72 = sphi 0, %s74
      %s75 = sphi 0, %s72
      %s76 = sphi 0, %s75
      %s92 = sphi 0, %s76
    $region4: #{tpu_custom_call.1} parent=1 // loop_header_branch
      %23 = sbr.rel (%p21) target = $region8
    $region5: #{tpu_custom_call.1} parent=1 // loop_body
      %s25 = ssub.s32 %s20, 1
      %s26 = ssub.s32 %s20, 2
      %s27 = sadd.s32 %s20, 1
      %s29 = sadd.s32 %s28, 1
      %p32 = scmp.eq.s32.totalorder %s20, 1
      %p33 = scmp.ne.s32.totalorder %s28, %s30
      %p34 = scmp.eq.s32.totalorder %s20, 0
      %p35 = por %p33, %p34
      %p36 = scmp.ne.s32.totalorder %s28, %s30
      %p37 = scmp.eq.s32.totalorder %s25, 1
      %p38 = por %p36, %p37
      %p39 = scmp.ne.s32.totalorder %s30, %s31
      %p40 = scmp.eq.s32.totalorder %s25, 0
      %p41 = por %p39, %p40
      %p42 = scmp.ne.s32.totalorder %s30, %s31
      %p43 = scmp.eq.s32.totalorder %s26, 1
      %p44 = por %p42, %p43
      %p46 = scmp.ne.s32.totalorder %s31, %s45
      %p47 = scmp.eq.s32.totalorder %s26, 0
      %p48 = por %p46, %p47
      %s50 = sadd.s32 %s49, 1
      %p53 = scmp.eq.s32.totalorder %s20, 1
      %p54 = scmp.ne.s32.totalorder %s49, %s51
      %p55 = scmp.eq.s32.totalorder %s20, 0
      %p56 = por %p54, %p55
      %p57 = scmp.ne.s32.totalorder %s49, %s51
      %p58 = scmp.eq.s32.totalorder %s25, 1
      %p59 = por %p57, %p58
      %p60 = scmp.ne.s32.totalorder %s51, %s52
      %p61 = scmp.eq.s32.totalorder %s25, 0
      %p62 = por %p60, %p61
      %p63 = scmp.ne.s32.totalorder %s51, %s52
      %p64 = scmp.eq.s32.totalorder %s26, 1
      %p65 = por %p63, %p64
      %p67 = scmp.ne.s32.totalorder %s52, %s66
      %p68 = scmp.eq.s32.totalorder %s26, 0
      %p69 = por %p67, %p68
      %s70 = ssub.s32 %s20, %s27
      %p71 = scmp.eq.s32.totalorder %s70, 0
      %s73 = sadd.s32 %s72, 1
      %s74 = scalar_select %p71, %s72, %s73
      %p77 = pneg %p71
      %p78 = scmp.eq.s32.totalorder %s20, 1
      %p79 = por %p77, %p78
      %p80 = scmp.ne.s32.totalorder %s72, %s75
      %p81 = scmp.eq.s32.totalorder %s20, 0
      %p82 = por %p80, %p81
      %p83 = scmp.ne.s32.totalorder %s72, %s75
      %p84 = scmp.eq.s32.totalorder %s25, 1
      %p85 = por %p83, %p84
      %p86 = scmp.ne.s32.totalorder %s75, %s76
      %p87 = scmp.eq.s32.totalorder %s25, 0
      %p88 = por %p86, %p87
      %p89 = scmp.ne.s32.totalorder %s75, %s76
      %p90 = scmp.eq.s32.totalorder %s26, 1
      %p91 = por %p89, %p90
      %p93 = scmp.ne.s32.totalorder %s76, %s92
      %p94 = scmp.eq.s32.totalorder %s26, 0
      %p95 = por %p93, %p94
      %p96 = scmp.le.s32.totalorder 1, %s20
      %p97 = scmp.lt.s32.totalorder %s20, 3
      %p98 = pnand %p96, %p97
      %p99 = pneg %p98
      // Predicated region
      $region9: #{tpu_custom_call.1} parent=5 // pred_check
        _
      $region10: #{tpu_custom_call.1} parent=5 // pred_check_branch
        %101 = sbr.rel (%p98) target = $region12
      $region11: #{tpu_custom_call.1} parent=5 // pred_region
        %s102 = ssub.s32 %s20, 1
        // Predicated region
        $region13: #{tpu_custom_call.1} parent=11 // pred_check
          %p103 = pneg %p41
        $region14: #{tpu_custom_call.1} parent=11 // pred_check_branch
          %105 = sbr.rel (%p103) target = $region16
        $region15: #{tpu_custom_call.1} parent=11 // pred_region
          _
        $region16: #{tpu_custom_call.1} parent=11 // pred_fallthru
          _
        // Predicated region
        $region17: #{tpu_custom_call.1} parent=11 // pred_check
          %p106 = pneg %p62
        $region18: #{tpu_custom_call.1} parent=11 // pred_check_branch
          %108 = sbr.rel (%p106) target = $region20
        $region19: #{tpu_custom_call.1} parent=11 // pred_region
          _
        $region20: #{tpu_custom_call.1} parent=11 // pred_fallthru
          _
      $region12: #{tpu_custom_call.1} parent=5 // pred_fallthru
        _
      %p109 = scmp.lt.s32.totalorder %s20, 2
      // Predicated region
      $region21: #{tpu_custom_call.1} parent=5 // pred_check
        %p110 = pneg %p109
      $region22: #{tpu_custom_call.1} parent=5 // pred_check_branch
        %112 = sbr.rel (%p110) target = $region24
      $region23: #{tpu_custom_call.1} parent=5 // pred_region
        _
      $region24: #{tpu_custom_call.1} parent=5 // pred_fallthru
        _
      %p113 = scmp.le.s32.totalorder 1, %s20
      %p114 = scmp.lt.s32.totalorder %s20, 3
      %p115 = pnand %p113, %p114
      %p116 = pneg %p115
      // Predicated region
      $region25: #{tpu_custom_call.1} parent=5 // pred_check
        _
      $region26: #{tpu_custom_call.1} parent=5 // pred_check_branch
        %118 = sbr.rel (%p115) target = $region28
      $region27: #{tpu_custom_call.1} parent=5 // pred_region
        %s119 = ssub.s32 %s20, 1
        %p120 = pneg %p41
        %p121 = pneg %p38
        %p122 = pneg %p62
        %p123 = pneg %p59
        %p124 = pneg %p88
        %p125 = pneg %p85
        %s126 = sand.u32 %s75, 1
        %s127 = scalar_lea.sflag [#allocation8], %s126
        %s128 = sand.u32 %s75, 1
        %s129 = smul.addr %s128, 8
        %s130 = scalar_lea.vmem [#allocation7], %s129
        %s131 = sand.u32 %s25, 1
        %p132 = scmp.eq.s32.totalorder %s25, 0
        // Predicated region
        $region29: #{tpu_custom_call.1} parent=27 // pred_check
          %p133 = pneg %p132
        $region30: #{tpu_custom_call.1} parent=27 // pred_check_branch
          %135 = sbr.rel (%p133) target = $region32
        $region31: #{tpu_custom_call.1} parent=27 // pred_region
          %s136 = sld [smem:[#allocation5]]
          %s137 = smul.addr %s136, 16
          %s138 = scalar_lea.hbm %s1, %s137
          // Predicated region
          $region33: #{tpu_custom_call.1} parent=31 // pred_check
            _
          $region34: #{tpu_custom_call.1} parent=31 // pred_check_branch
            %140 = sbr.rel target = $region36
          $region35: #{tpu_custom_call.1} parent=31 // pred_region
            %141 = sst [smem:[#allocation11]] [#allocation10]
            %142 = sst [smem:[#allocation12]] [#allocation9]
          $region36: #{tpu_custom_call.1} parent=31 // pred_fallthru
            _
          %144 = shalt.err (0)
          %s146 = sshll.u32 [#allocation2], 4
          %s147 = int_to_ptr.vmem [resolvable:$true] %s146
          %149 = dma.hbm_to_vmem [thread:$0]  %s138, 16, %s147, [#allocation3]
          %s150 = sld [smem:[#allocation5 + $0x1]]
          %s151 = smul.addr %s150, 16
          %s152 = scalar_lea.hbm %s1, %s151
          %s153 = scalar_lea.vmem [#allocation2], 1
          // Predicated region
          $region37: #{tpu_custom_call.1} parent=31 // pred_check
            _
          $region38: #{tpu_custom_call.1} parent=31 // pred_check_branch
            %155 = sbr.rel target = $region40
          $region39: #{tpu_custom_call.1} parent=31 // pred_region
            %156 = sst [smem:[#allocation11]] [#allocation14]
            %157 = sst [smem:[#allocation12]] [#allocation13]
          $region40: #{tpu_custom_call.1} parent=31 // pred_fallthru
            _
          %159 = shalt.err (0)
          %s161 = sshll.u32 %s153, 4
          %s162 = int_to_ptr.vmem [resolvable:$true] %s161
          %164 = dma.hbm_to_vmem [thread:$0]  %s152, 16, %s162, [#allocation3]
          %s165 = sld [smem:[#allocation5 + $0x2]]
          %s166 = smul.addr %s165, 16
          %s167 = scalar_lea.hbm %s1, %s166
          %s168 = scalar_lea.vmem [#allocation2], 2
          // Predicated region
          $region41: #{tpu_custom_call.1} parent=31 // pred_check
            _
          $region42: #{tpu_custom_call.1} parent=31 // pred_check_branch
            %170 = sbr.rel target = $region44
          $region43: #{tpu_custom_call.1} parent=31 // pred_region
            %171 = sst [smem:[#allocation11]] [#allocation16]
            %172 = sst [smem:[#allocation12]] [#allocation15]
          $region44: #{tpu_custom_call.1} parent=31 // pred_fallthru
            _
          %174 = shalt.err (0)
          %s176 = sshll.u32 %s168, 4
          %s177 = int_to_ptr.vmem [resolvable:$true] %s176
          %179 = dma.hbm_to_vmem [thread:$0]  %s167, 16, %s177, [#allocation3]
          %s180 = sld [smem:[#allocation5 + $0x3]]
          %s181 = smul.addr %s180, 16
          %s182 = scalar_lea.hbm %s1, %s181
          %s183 = scalar_lea.vmem [#allocation2], 3
          // Predicated region
          $region45: #{tpu_custom_call.1} parent=31 // pred_check
            _
          $region46: #{tpu_custom_call.1} parent=31 // pred_check_branch
            %185 = sbr.rel target = $region48
          $region47: #{tpu_custom_call.1} parent=31 // pred_region
            %186 = sst [smem:[#allocation11]] [#allocation18]
            %187 = sst [smem:[#allocation12]] [#allocation17]
          $region48: #{tpu_custom_call.1} parent=31 // pred_fallthru
            _
          %189 = shalt.err (0)
          %s191 = sshll.u32 %s183, 4
          %s192 = int_to_ptr.vmem [resolvable:$true] %s191
          %194 = dma.hbm_to_vmem [thread:$0]  %s182, 16, %s192, [#allocation3]
          %s195 = sld [smem:[#allocation5 + $0x4]]
          %s196 = smul.addr %s195, 16
          %s197 = scalar_lea.hbm %s1, %s196
          %s198 = scalar_lea.vmem [#allocation2], 4
          // Predicated region
          $region49: #{tpu_custom_call.1} parent=31 // pred_check
            _
          $region50: #{tpu_custom_call.1} parent=31 // pred_check_branch
            %200 = sbr.rel target = $region52
          $region51: #{tpu_custom_call.1} parent=31 // pred_region
            %201 = sst [smem:[#allocation11]] [#allocation20]
            %202 = sst [smem:[#allocation12]] [#allocation19]
          $region52: #{tpu_custom_call.1} parent=31 // pred_fallthru
            _
          %204 = shalt.err (0)
          %s206 = sshll.u32 %s198, 4
          %s207 = int_to_ptr.vmem [resolvable:$true] %s206
          %209 = dma.hbm_to_vmem [thread:$0]  %s197, 16, %s207, [#allocation3]
          %s210 = sld [smem:[#allocation5 + $0x5]]
          %s211 = smul.addr %s210, 16
          %s212 = scalar_lea.hbm %s1, %s211
          %s213 = scalar_lea.vmem [#allocation2], 5
          // Predicated region
          $region53: #{tpu_custom_call.1} parent=31 // pred_check
            _
          $region54: #{tpu_custom_call.1} parent=31 // pred_check_branch
            %215 = sbr.rel target = $region56
          $region55: #{tpu_custom_call.1} parent=31 // pred_region
            %216 = sst [smem:[#allocation11]] [#allocation22]
            %217 = sst [smem:[#allocation12]] [#allocation21]
          $region56: #{tpu_custom_call.1} parent=31 // pred_fallthru
            _
          %219 = shalt.err (0)
          %s221 = sshll.u32 %s213, 4
          %s222 = int_to_ptr.vmem [resolvable:$true] %s221
          %224 = dma.hbm_to_vmem [thread:$0]  %s212, 16, %s222, [#allocation3]
          %s225 = sld [smem:[#allocation5 + $0x6]]
          %s226 = smul.addr %s225, 16
          %s227 = scalar_lea.hbm %s1, %s226
          %s228 = scalar_lea.vmem [#allocation2], 6
          // Predicated region
          $region57: #{tpu_custom_call.1} parent=31 // pred_check
            _
          $region58: #{tpu_custom_call.1} parent=31 // pred_check_branch
            %230 = sbr.rel target = $region60
          $region59: #{tpu_custom_call.1} parent=31 // pred_region
            %231 = sst [smem:[#allocation11]] [#allocation24]
            %232 = sst [smem:[#allocation12]] [#allocation23]
          $region60: #{tpu_custom_call.1} parent=31 // pred_fallthru
            _
          %234 = shalt.err (0)
          %s236 = sshll.u32 %s228, 4
          %s237 = int_to_ptr.vmem [resolvable:$true] %s236
          %239 = dma.hbm_to_vmem [thread:$0]  %s227, 16, %s237, [#allocation3]
          %s240 = sld [smem:[#allocation5 + $0x7]]
          %s241 = smul.addr %s240, 16
          %s242 = scalar_lea.hbm %s1, %s241
          %s243 = scalar_lea.vmem [#allocation2], 7
          // Predicated region
          $region61: #{tpu_custom_call.1} parent=31 // pred_check
            _
          $region62: #{tpu_custom_call.1} parent=31 // pred_check_branch
            %245 = sbr.rel target = $region64
          $region63: #{tpu_custom_call.1} parent=31 // pred_region
            %246 = sst [smem:[#allocation11]] [#allocation26]
            %247 = sst [smem:[#allocation12]] [#allocation25]
          $region64: #{tpu_custom_call.1} parent=31 // pred_fallthru
            _
          %249 = shalt.err (0)
          %s251 = sshll.u32 %s243, 4
          %s252 = int_to_ptr.vmem [resolvable:$true] %s251
          %254 = dma.hbm_to_vmem [thread:$0]  %s242, 16, %s252, [#allocation3]
        $region32: #{tpu_custom_call.1} parent=27 // pred_fallthru
          _
        %s255 = sadd.s32 %s25, 1
        %p256 = scmp.lt.s32.totalorder %s255, 2
        // Predicated region
        $region65: #{tpu_custom_call.1} parent=27 // pred_check
          %p257 = pneg %p256
        $region66: #{tpu_custom_call.1} parent=27 // pred_check_branch
          %259 = sbr.rel (%p257) target = $region68
        $region67: #{tpu_custom_call.1} parent=27 // pred_region
          %s260 = ssub.s32 1, %s131
          %s261 = smul.u32 %s255, 8
          %s262 = sld [smem:[#allocation5 + %s261]]
          %s263 = smul.addr %s262, 16
          %s264 = scalar_lea.hbm %s1, %s263
          %s265 = smul.u32 %s260, 8
          %s266 = scalar_lea.vmem [#allocation2], %s265
          %s267 = scalar_lea.sflag [#allocation3], %s260
          // Predicated region
          $region69: #{tpu_custom_call.1} parent=67 // pred_check
            _
          $region70: #{tpu_custom_call.1} parent=67 // pred_check_branch
            %269 = sbr.rel target = $region72
          $region71: #{tpu_custom_call.1} parent=67 // pred_region
            %270 = sst [smem:[#allocation11]] [#allocation28]
            %271 = sst [smem:[#allocation12]] [#allocation27]
          $region72: #{tpu_custom_call.1} parent=67 // pred_fallthru
            _
          %273 = shalt.err (0)
          %s275 = sshll.u32 %s266, 4
          %s276 = int_to_ptr.vmem [resolvable:$true] %s275
          %278 = dma.hbm_to_vmem [thread:$0]  %s264, 16, %s276, %s267
          %s279 = sadd.s32 %s261, 1
          %s280 = sld [smem:[#allocation5 + %s279]]
          %s281 = smul.addr %s280, 16
          %s282 = scalar_lea.hbm %s1, %s281
          %s283 = sadd.s32 1, %s265
          %s284 = scalar_lea.vmem [#allocation2], %s283
          // Predicated region
          $region73: #{tpu_custom_call.1} parent=67 // pred_check
            _
          $region74: #{tpu_custom_call.1} parent=67 // pred_check_branch
            %286 = sbr.rel target = $region76
          $region75: #{tpu_custom_call.1} parent=67 // pred_region
            %287 = sst [smem:[#allocation11]] [#allocation30]
            %288 = sst [smem:[#allocation12]] [#allocation29]
          $region76: #{tpu_custom_call.1} parent=67 // pred_fallthru
            _
          %290 = shalt.err (0)
          %s292 = sshll.u32 %s284, 4
          %s293 = int_to_ptr.vmem [resolvable:$true] %s292
          %295 = dma.hbm_to_vmem [thread:$0]  %s282, 16, %s293, %s267
          %s296 = sadd.s32 %s261, 2
          %s297 = sld [smem:[#allocation5 + %s296]]
          %s298 = smul.addr %s297, 16
          %s299 = scalar_lea.hbm %s1, %s298
          %s300 = sadd.s32 2, %s265
          %s301 = scalar_lea.vmem [#allocation2], %s300
          // Predicated region
          $region77: #{tpu_custom_call.1} parent=67 // pred_check
            _
          $region78: #{tpu_custom_call.1} parent=67 // pred_check_branch
            %303 = sbr.rel target = $region80
          $region79: #{tpu_custom_call.1} parent=67 // pred_region
            %304 = sst [smem:[#allocation11]] [#allocation32]
            %305 = sst [smem:[#allocation12]] [#allocation31]
          $region80: #{tpu_custom_call.1} parent=67 // pred_fallthru
            _
          %307 = shalt.err (0)
          %s309 = sshll.u32 %s301, 4
          %s310 = int_to_ptr.vmem [resolvable:$true] %s309
          %312 = dma.hbm_to_vmem [thread:$0]  %s299, 16, %s310, %s267
          %s313 = sadd.s32 %s261, 3
          %s314 = sld [smem:[#allocation5 + %s313]]
          %s315 = smul.addr %s314, 16
          %s316 = scalar_lea.hbm %s1, %s315
          %s317 = sadd.s32 3, %s265
          %s318 = scalar_lea.vmem [#allocation2], %s317
          // Predicated region
          $region81: #{tpu_custom_call.1} parent=67 // pred_check
            _
          $region82: #{tpu_custom_call.1} parent=67 // pred_check_branch
            %320 = sbr.rel target = $region84
          $region83: #{tpu_custom_call.1} parent=67 // pred_region
            %321 = sst [smem:[#allocation11]] [#allocation34]
            %322 = sst [smem:[#allocation12]] [#allocation33]
          $region84: #{tpu_custom_call.1} parent=67 // pred_fallthru
            _
          %324 = shalt.err (0)
          %s326 = sshll.u32 %s318, 4
          %s327 = int_to_ptr.vmem [resolvable:$true] %s326
          %329 = dma.hbm_to_vmem [thread:$0]  %s316, 16, %s327, %s267
          %s330 = sadd.s32 %s261, 4
          %s331 = sld [smem:[#allocation5 + %s330]]
          %s332 = smul.addr %s331, 16
          %s333 = scalar_lea.hbm %s1, %s332
          %s334 = sadd.s32 4, %s265
          %s335 = scalar_lea.vmem [#allocation2], %s334
          // Predicated region
          $region85: #{tpu_custom_call.1} parent=67 // pred_check
            _
          $region86: #{tpu_custom_call.1} parent=67 // pred_check_branch
            %337 = sbr.rel target = $region88
          $region87: #{tpu_custom_call.1} parent=67 // pred_region
            %338 = sst [smem:[#allocation11]] [#allocation36]
            %339 = sst [smem:[#allocation12]] [#allocation35]
          $region88: #{tpu_custom_call.1} parent=67 // pred_fallthru
            _
          %341 = shalt.err (0)
          %s343 = sshll.u32 %s335, 4
          %s344 = int_to_ptr.vmem [resolvable:$true] %s343
          %346 = dma.hbm_to_vmem [thread:$0]  %s333, 16, %s344, %s267
          %s347 = sadd.s32 %s261, 5
          %s348 = sld [smem:[#allocation5 + %s347]]
          %s349 = smul.addr %s348, 16
          %s350 = scalar_lea.hbm %s1, %s349
          %s351 = sadd.s32 5, %s265
          %s352 = scalar_lea.vmem [#allocation2], %s351
          // Predicated region
          $region89: #{tpu_custom_call.1} parent=67 // pred_check
            _
          $region90: #{tpu_custom_call.1} parent=67 // pred_check_branch
            %354 = sbr.rel target = $region92
          $region91: #{tpu_custom_call.1} parent=67 // pred_region
            %355 = sst [smem:[#allocation11]] [#allocation38]
            %356 = sst [smem:[#allocation12]] [#allocation37]
          $region92: #{tpu_custom_call.1} parent=67 // pred_fallthru
            _
          %358 = shalt.err (0)
          %s360 = sshll.u32 %s352, 4
          %s361 = int_to_ptr.vmem [resolvable:$true] %s360
          %363 = dma.hbm_to_vmem [thread:$0]  %s350, 16, %s361, %s267
          %s364 = sadd.s32 %s261, 6
          %s365 = sld [smem:[#allocation5 + %s364]]
          %s366 = smul.addr %s365, 16
          %s367 = scalar_lea.hbm %s1, %s366
          %s368 = sadd.s32 6, %s265
          %s369 = scalar_lea.vmem [#allocation2], %s368
          // Predicated region
          $region93: #{tpu_custom_call.1} parent=67 // pred_check
            _
          $region94: #{tpu_custom_call.1} parent=67 // pred_check_branch
            %371 = sbr.rel target = $region96
          $region95: #{tpu_custom_call.1} parent=67 // pred_region
            %372 = sst [smem:[#allocation11]] [#allocation40]
            %373 = sst [smem:[#allocation12]] [#allocation39]
          $region96: #{tpu_custom_call.1} parent=67 // pred_fallthru
            _
          %375 = shalt.err (0)
          %s377 = sshll.u32 %s369, 4
          %s378 = int_to_ptr.vmem [resolvable:$true] %s377
          %380 = dma.hbm_to_vmem [thread:$0]  %s367, 16, %s378, %s267
          %s381 = sadd.s32 %s261, 7
          %s382 = sld [smem:[#allocation5 + %s381]]
          %s383 = smul.addr %s382, 16
          %s384 = scalar_lea.hbm %s1, %s383
          %s385 = sadd.s32 7, %s265
          %s386 = scalar_lea.vmem [#allocation2], %s385
          // Predicated region
          $region97: #{tpu_custom_call.1} parent=67 // pred_check
            _
          $region98: #{tpu_custom_call.1} parent=67 // pred_check_branch
            %388 = sbr.rel target = $region100
          $region99: #{tpu_custom_call.1} parent=67 // pred_region
            %389 = sst [smem:[#allocation11]] [#allocation42]
            %390 = sst [smem:[#allocation12]] [#allocation41]
          $region100: #{tpu_custom_call.1} parent=67 // pred_fallthru
            _
          %392 = shalt.err (0)
          %s394 = sshll.u32 %s386, 4
          %s395 = int_to_ptr.vmem [resolvable:$true] %s394
          %397 = dma.hbm_to_vmem [thread:$0]  %s384, 16, %s395, %s267
        $region68: #{tpu_custom_call.1} parent=27 // pred_fallthru
          _
        %s398 = scalar_lea.sflag [#allocation3], %s131
        %s399 = smul.u32 1, 1
        %s400 = sshll.u32 %s399, 4
        %401 = dma.done %s398, %s400
        %s402 = sshll.u32 %s399, 4
        %403 = dma.done %s398, %s402
        %s404 = sshll.u32 %s399, 4
        %405 = dma.done %s398, %s404
        %s406 = sshll.u32 %s399, 4
        %407 = dma.done %s398, %s406
        %s408 = sshll.u32 %s399, 4
        %409 = dma.done %s398, %s408
        %s410 = sshll.u32 %s399, 4
        %411 = dma.done %s398, %s410
        %s412 = sshll.u32 %s399, 4
        %413 = dma.done %s398, %s412
        %s414 = sshll.u32 %s399, 4
        %415 = dma.done %s398, %s414
        %s416 = smul.u32 %s131, 8
        %s417 = scalar_lea.vmem [#allocation2], %s416
        %v418 = vld [vmem:[%s417] sm:$0xff]
        %v419 = vld [vmem:[%s2] sm:$0x1]
        %v421 = vlaneseq
        %v422 = vshrl.u32 %v421, 7
        %v423 = vsub.s32 0, %v422
        %v424 = vrot.slane %v419, %v423
        %v426 = vmul.f32 %v418, %v424
        %427 = vadd.xlane.f32.xlu0 %v426
        %v428 = vpop.xlane.xlu0 %427
        %s429 = sld [smem:[#allocation6]]
        %v430 = vstv %s429
        %v431 = vadd.f32 %v428, %v430
        %v432 = vsub.f32 0.0, %v431
        %v433 = vmul.f32 %v432, 1.442695
        %v434 = vpow.pop %v433
        %v435 = vadd.f32 %v434, 1.0
        %v436 = vrcp.pop %v435
        %437 = vst [vmem:[%s130] sm:$0xff] %v436
        %s438 = sand.u32 %s75, 1
        %s439 = scalar_lea.sflag [#allocation8], %s438
        %s440 = sand.u32 %s75, 1
        %s441 = smul.addr %s440, 8
        %s442 = scalar_lea.vmem [#allocation7], %s441
        // Predicated region
        $region101: #{tpu_custom_call.1} parent=27 // pred_check
          %p443 = pneg %p85
        $region102: #{tpu_custom_call.1} parent=27 // pred_check_branch
          %445 = sbr.rel (%p443) target = $region104
        $region103: #{tpu_custom_call.1} parent=27 // pred_region
          %s447 = ssub.s32 128, 128
          %448 = vsyncadd %s439, %s447
          %s449 = smul.addr %s25, 128
          %s450 = scalar_lea.hbm %s4, %s449
          %s452 = sshll.u32 %s442, 4
          %s453 = int_to_ptr.vmem [resolvable:$true] %s452
          %455 = dma.vmem_to_hbm [thread:$0]  %s453, 128, %s450, %s439
        $region104: #{tpu_custom_call.1} parent=27 // pred_fallthru
          _
      $region28: #{tpu_custom_call.1} parent=5 // pred_fallthru
        _
      %p456 = scmp.le.s32.totalorder 2, %s20
      // Predicated region
      $region105: #{tpu_custom_call.1} parent=5 // pred_check
        %p457 = pneg %p456
      $region106: #{tpu_custom_call.1} parent=5 // pred_check_branch
        %459 = sbr.rel (%p457) target = $region108
      $region107: #{tpu_custom_call.1} parent=5 // pred_region
        %s460 = ssub.s32 %s20, 2
        // Predicated region
        $region109: #{tpu_custom_call.1} parent=107 // pred_check
          %p461 = pneg %p91
        $region110: #{tpu_custom_call.1} parent=107 // pred_check_branch
          %463 = sbr.rel (%p461) target = $region112
        $region111: #{tpu_custom_call.1} parent=107 // pred_region
          %s464 = sand.u32 %s76, 1
          %s465 = scalar_lea.sflag [#allocation8], %s464
          %s466 = sand.u32 %s76, 1
          %s467 = smul.addr %s466, 8
          %s468 = scalar_lea.vmem [#allocation7], %s467
          %469 = dma.done %s465, 128
        $region112: #{tpu_custom_call.1} parent=107 // pred_fallthru
          _
      $region108: #{tpu_custom_call.1} parent=5 // pred_fallthru
        _
    $region6: #{tpu_custom_call.1} parent=1 // loop_footer
      %s24 = sadd.s32 1, %s20
    $region7: #{tpu_custom_call.1} parent=1 // loop_footer_branch
      %19 = sbr.rel target = $region3
    $region8: #{tpu_custom_call.1} parent=1 // loop_exit
      _
    %470 = vsyncpa [#allocation8], 1
    %s471 = scalar_lea.sflag [#allocation8], 1
    %472 = vsyncpa %s471, 1
  %473 = vsyncmov [#allocation3]
  %s474 = vpop.sfrf %473
  %p475 = scmp.eq.s32.totalorder %s474, 0
  %p476 = pneg %p475
  %478 = shalt.err (%p476)
  %s479 = scalar_lea.sflag [#allocation3], 1
  %480 = vsyncmov %s479
  %s481 = vpop.sfrf %480
  %p482 = scmp.eq.s32.totalorder %s481, 0
  %p483 = pneg %p482
  %485 = shalt.err (%p483)

</llo_original>
